<compile_context>
chip_gen: v6e
topology: v6e:2x2x1
jax: 0.10.0
libtpu: 0.0.40
codegen_flags: <defaults>
</compile_context>

<pallas_src>
import functools

import jax
import jax.numpy as jnp
from jax.experimental import pallas as pl
from jax.experimental.pallas import tpu as pltpu

SMOOTHING = 0.1
CONFIDENCE = 1.0 - SMOOTHING


def _ls_ce_kernel(col_ref, x_ref, t_ref, psum_ref, *, n_rows, tile_rows,
                  num_classes):
    """One (tile_rows, C) block of logits -> scalar partial loss sum."""
    i = pl.program_id(0)

    x = x_ref[...].astype(jnp.float32)                 # (TN, C), cast in-kernel
    t = t_ref[...]                                     # (TN, 1) int32 targets
    col = col_ref[...]                                 # (1, C) int32 column ids

    # Numerically stable pieces; xm is reused by every term.
    m = jnp.max(x, axis=-1, keepdims=True)             # (TN, 1)
    xm = x - m                                         # (TN, C)
    log_s = jnp.log(jnp.sum(jnp.exp(xm), axis=-1, keepdims=True))  # (TN, 1)

    # Folded label-smoothing loss (weights sum to 1, so the +m/-m cancel):
    #   loss = lse - sum(x * w)
    #        = log(s) - conf * xm[target] - (smooth/C) * sum(xm)
    picked = jnp.sum(jnp.where(col == t, xm, 0.0), axis=-1, keepdims=True)
    row_sum = jnp.sum(xm, axis=-1, keepdims=True)
    loss = log_s - CONFIDENCE * picked - (SMOOTHING / num_classes) * row_sum

    def _write(value):
        psum_ref[...] = jnp.full(psum_ref.shape, value, psum_ref.dtype)

    if n_rows % tile_rows == 0:
        # No padded rows anywhere: plain sum on every tile.
        _write(jnp.sum(loss))
    else:
        last = pl.num_programs(0) - 1

        @pl.when(i != last)
        def _():
            _write(jnp.sum(loss))

        @pl.when(i == last)
        def _():
            # Select-away (not multiply) padded rows so garbage/NaN rows from
            # the padded HBM block cannot leak into the sum.
            row = jax.lax.broadcasted_iota(jnp.int32, loss.shape, 0)
            valid = (i * tile_rows + row) < n_rows
            _write(jnp.sum(jnp.where(valid, loss, 0.0)))


def label_smoothing_cross_entropy(x, target, *, tile_rows=None):
    """x: (N, C) float logits (f32/bf16), target: (N,) int class ids -> scalar loss."""
    n, c = x.shape
    t2d = target.astype(jnp.int32).reshape(n, 1)
    col_ids = jnp.arange(c, dtype=jnp.int32).reshape(1, c)

    if tile_rows is None:
        # VMEM working-set model, bytes per logits row:
        #   2x double-buffered logits block            : 2 * C * itemsize
        #   ~4 live f32 (TN, C) temporaries in-kernel  : 16 * C
        #   2x double-buffered (TN, 1) target block,
        #     lane-padded to 128 int32 lanes           : 1024
        # Budget ~20 MiB so the whole pipeline fits in a 32 MiB scoped-VMEM
        # limit on v5e / v6e / v7x (v7x only has 64 MiB physical VMEM).
        per_row = c * (2 * x.dtype.itemsize + 16) + 1024
        budget = 20 << 20
        tile_rows = budget // max(1, per_row)
    tile_rows = max(32, (int(tile_rows) // 32) * 32)
    # Never bigger than the (32-row padded) batch.
    tile_rows = min(tile_rows, ((n + 31) // 32) * 32)
    # Keep >= 2 grid blocks whenever the batch allows it, so the "parallel"
    # grid axis can feed both v7x TensorCores (irrelevant on v5e/v6e: 1 TC).
    if n >= 64:
        tile_rows = min(tile_rows, ((pl.cdiv(n, 2) + 31) // 32) * 32)

    num_blocks = pl.cdiv(n, tile_rows)

    kernel = functools.partial(
        _ls_ce_kernel, n_rows=n, tile_rows=tile_rows, num_classes=c)

    partials = pl.pallas_call(
        kernel,
        out_shape=jax.ShapeDtypeStruct((num_blocks, 8, 128), jnp.float32),
        grid_spec=pltpu.PrefetchScalarGridSpec(
            num_scalar_prefetch=0,
            grid=(num_blocks,),
            in_specs=[
                # Grid-invariant column ids: constant index_map -> stays
                # resident in VMEM, DMA'd once.
                pl.BlockSpec((1, c), lambda i: (0, 0)),
                pl.BlockSpec((tile_rows, c), lambda i: (i, 0)),
                pl.BlockSpec((tile_rows, 1), lambda i: (i, 0)),
            ],
            out_specs=pl.BlockSpec((1, 8, 128), lambda i: (i, 0, 0)),
        ),
        compiler_params=pltpu.CompilerParams(
            dimension_semantics=("parallel",),
            vmem_limit_bytes=32 * 1024 * 1024),
    )(col_ids, x, t2d)

    # Tiny finalize in JAX: sum per-block partials, divide by true batch size.
    return jnp.sum(partials[:, 0, 0]) / n


def _reference(x, target):
    # Pure-JAX reference matching the PyTorch forward.
    logprobs = jax.nn.log_softmax(x.astype(jnp.float32), axis=-1)
    nll = -jnp.take_along_axis(
        logprobs, target[:, None].astype(jnp.int32), axis=-1)[:, 0]
    smooth = -jnp.mean(logprobs, axis=-1)
    return jnp.mean(CONFIDENCE * nll + SMOOTHING * smooth)


if __name__ == "__main__":
    key = jax.random.PRNGKey(0)
    kx, kt = jax.random.split(key)
    # N not a multiple of the tile -> exercises the 2-block parallel grid plus
    # the masked partial last tile.
    N, C = 200, 96
    x = jax.random.normal(kx, (N, C), dtype=jnp.float32)
    target = jax.random.randint(kt, (N,), 0, C, dtype=jnp.int32)

    loss = jax.block_until_ready(label_smoothing_cross_entropy(x, target))
    ref = jax.block_until_ready(_reference(x, target))
    assert jnp.allclose(loss, ref, atol=1e-5, rtol=1e-5), (loss, ref)
    print("KERNEL_OK")
</pallas_src>

<mosaic_0001>
module attributes {stable_mosaic.version = 11 : i64} {
  func.func @_ls_ce_kernel(%arg0: i32, %arg1: memref<1x96xi32, #tpu.memory_space<vmem>>, %arg2: memref<128x96xf32, #tpu.memory_space<vmem>>, %arg3: memref<128x1xi32, #tpu.memory_space<vmem>>, %arg4: memref<1x8x128xf32, #tpu.memory_space<vmem>>) attributes {dimension_semantics = [#tpu.dimension_semantics<parallel>], iteration_bounds = array<i64: 2>, scalar_prefetch = 0 : i64, scratch_operands = 0 : i64, tpu.core_type = #tpu.core_type<tc>, window_params = [{pipeline_mode = #tpu.pipeline_mode<synchronous>, transform_indices = @transform_0, window_bounds = array<i64: 1, 96>}, {transform_indices = @transform_1, window_bounds = array<i64: 128, 96>}, {transform_indices = @transform_2, window_bounds = array<i64: 128, 1>}, {transform_indices = @transform_3, window_bounds = array<i64: 1, 8, 128>}]} {
    %c0 = arith.constant 0 : index
    %c0_0 = arith.constant 0 : index
    %0 = vector.load %arg2[%c0, %c0_0] : memref<128x96xf32, #tpu.memory_space<vmem>>, vector<128x96xf32>
    %c0_1 = arith.constant 0 : index
    %c0_2 = arith.constant 0 : index
    %1 = vector.load %arg3[%c0_1, %c0_2] : memref<128x1xi32, #tpu.memory_space<vmem>>, vector<128x1xi32>
    %c0_3 = arith.constant 0 : index
    %c0_4 = arith.constant 0 : index
    %2 = vector.load %arg1[%c0_3, %c0_4] : memref<1x96xi32, #tpu.memory_space<vmem>>, vector<1x96xi32>
    %cst = arith.constant dense<0xFF800000> : vector<128xf32>
    %3 = vector.multi_reduction <maximumf>, %0, %cst [1] : vector<128x96xf32> to vector<128xf32>
    %4 = vector.shape_cast %3 : vector<128xf32> to vector<128x1xf32>
    %5 = vector.broadcast %4 : vector<128x1xf32> to vector<128x96xf32>
    %6 = arith.subf %0, %5 : vector<128x96xf32>
    %7 = math.exp %6 : vector<128x96xf32>
    %cst_5 = arith.constant dense<0.000000e+00> : vector<128xf32>
    %8 = vector.multi_reduction <add>, %7, %cst_5 [1] : vector<128x96xf32> to vector<128xf32>
    %9 = vector.shape_cast %8 : vector<128xf32> to vector<128x1xf32>
    %10 = math.log %9 : vector<128x1xf32>
    %11 = vector.broadcast %2 : vector<1x96xi32> to vector<128x96xi32>
    %12 = vector.broadcast %1 : vector<128x1xi32> to vector<128x96xi32>
    %13 = arith.cmpi eq, %11, %12 : vector<128x96xi32>
    %cst_6 = arith.constant 0.000000e+00 : f32
    %14 = vector.broadcast %cst_6 : f32 to vector<128x96xf32>
    %15 = arith.select %13, %6, %14 : vector<128x96xi1>, vector<128x96xf32>
    %cst_7 = arith.constant dense<0.000000e+00> : vector<128xf32>
    %16 = vector.multi_reduction <add>, %15, %cst_7 [1] : vector<128x96xf32> to vector<128xf32>
    %17 = vector.shape_cast %16 : vector<128xf32> to vector<128x1xf32>
    %cst_8 = arith.constant dense<0.000000e+00> : vector<128xf32>
    %18 = vector.multi_reduction <add>, %6, %cst_8 [1] : vector<128x96xf32> to vector<128xf32>
    %19 = vector.shape_cast %18 : vector<128xf32> to vector<128x1xf32>
    %cst_9 = arith.constant 0.899999976 : f32
    %20 = vector.broadcast %cst_9 : f32 to vector<128x1xf32>
    %21 = arith.mulf %20, %17 : vector<128x1xf32>
    %22 = arith.subf %10, %21 : vector<128x1xf32>
    %cst_10 = arith.constant 0.00104166672 : f32
    %23 = vector.broadcast %cst_10 : f32 to vector<128x1xf32>
    %24 = arith.mulf %23, %19 : vector<128x1xf32>
    %25 = arith.subf %22, %24 : vector<128x1xf32>
    %c1_i32 = arith.constant 1 : i32
    %26 = arith.cmpi ne, %arg0, %c1_i32 : i32
    %27 = arith.extui %26 : i1 to i32
    %c0_i32 = arith.constant 0 : i32
    %28 = arith.cmpi ne, %27, %c0_i32 : i32
    scf.if %28 {
      %32 = vector.shape_cast %25 : vector<128x1xf32> to vector<1x128x1xf32>
      %cst_13 = arith.constant dense<0.000000e+00> : vector<1xf32>
      %33 = vector.multi_reduction <add>, %32, %cst_13 [1, 2] : vector<1x128x1xf32> to vector<1xf32>
      %34 = vector.shape_cast %33 : vector<1xf32> to vector<1x1x1xf32>
      %35 = vector.extract %34[0, 0, 0] : f32 from vector<1x1x1xf32>
      %36 = vector.broadcast %35 : f32 to vector<1x8x128xf32>
      %c0_14 = arith.constant 0 : index
      %c0_15 = arith.constant 0 : index
      %c0_16 = arith.constant 0 : index
      %37 = vector.load %arg4[%c0_14, %c0_15, %c0_16] : memref<1x8x128xf32, #tpu.memory_space<vmem>>, vector<1x8x128xf32>
      tpu.vector_store %arg4[%c0_14, %c0_15, %c0_16], %36 {strides = array<i32>} : memref<1x8x128xf32, #tpu.memory_space<vmem>>, vector<1x8x128xf32>,
    } else {
    }
    %c1_i32_11 = arith.constant 1 : i32
    %29 = arith.cmpi eq, %arg0, %c1_i32_11 : i32
    %30 = arith.extui %29 : i1 to i32
    %c0_i32_12 = arith.constant 0 : i32
    %31 = arith.cmpi ne, %30, %c0_i32_12 : i32
    scf.if %31 {
      %32 = tpu.iota {dimensions = array<i32: 0>} : vector<128x1xi32>
      %c128_i32 = arith.constant 128 : i32
      %33 = arith.muli %arg0, %c128_i32 : i32
      %34 = vector.broadcast %33 : i32 to vector<128x1xi32>
      %35 = arith.addi %34, %32 : vector<128x1xi32>
      %c200_i32 = arith.constant 200 : i32
      %36 = vector.broadcast %c200_i32 : i32 to vector<128x1xi32>
      %37 = arith.cmpi slt, %35, %36 : vector<128x1xi32>
      %cst_13 = arith.constant 0.000000e+00 : f32
      %38 = vector.broadcast %cst_13 : f32 to vector<128x1xf32>
      %39 = arith.select %37, %25, %38 : vector<128x1xi1>, vector<128x1xf32>
      %40 = vector.shape_cast %39 : vector<128x1xf32> to vector<1x128x1xf32>
      %cst_14 = arith.constant dense<0.000000e+00> : vector<1xf32>
      %41 = vector.multi_reduction <add>, %40, %cst_14 [1, 2] : vector<1x128x1xf32> to vector<1xf32>
      %42 = vector.shape_cast %41 : vector<1xf32> to vector<1x1x1xf32>
      %43 = vector.extract %42[0, 0, 0] : f32 from vector<1x1x1xf32>
      %44 = vector.broadcast %43 : f32 to vector<1x8x128xf32>
      %c0_15 = arith.constant 0 : index
      %c0_16 = arith.constant 0 : index
      %c0_17 = arith.constant 0 : index
      %45 = vector.load %arg4[%c0_15, %c0_16, %c0_17] : memref<1x8x128xf32, #tpu.memory_space<vmem>>, vector<1x8x128xf32>
      tpu.vector_store %arg4[%c0_15, %c0_16, %c0_17], %44 {strides = array<i32>} : memref<1x8x128xf32, #tpu.memory_space<vmem>>, vector<1x8x128xf32>,
    } else {
    }
    return
  }
  func.func @transform_0(%arg0: i32) -> (i32, i32) {
    %c0_i32 = arith.constant 0 : i32
    %c0_i32_0 = arith.constant 0 : i32
    %c0_i32_1 = arith.constant 0 : i32
    return %c0_i32, %c0_i32_0 : i32, i32
  }
  func.func @transform_1(%arg0: i32) -> (i32, i32) {
    %c0_i32 = arith.constant 0 : i32
    %c0_i32_0 = arith.constant 0 : i32
    return %arg0, %c0_i32 : i32, i32
  }
  func.func @transform_2(%arg0: i32) -> (i32, i32) {
    %c0_i32 = arith.constant 0 : i32
    %c0_i32_0 = arith.constant 0 : i32
    return %arg0, %c0_i32 : i32, i32
  }
  func.func @transform_3(%arg0: i32) -> (i32, i32, i32) {
    %c0_i32 = arith.constant 0 : i32
    %c0_i32_0 = arith.constant 0 : i32
    %c0_i32_1 = arith.constant 0 : i32
    return %arg0, %c0_i32, %c0_i32_0 : i32, i32, i32
  }
}

</mosaic_0001>

<llo_original>
// kernel: tpu_custom_call.1
$region0: #{tpu_custom_call.1}
  #allocation0 [shape = 'u32[]', space=smem, size = 0x4, offset = 0x4, fixed_abs, tag = 'smem constant byte address 0x4 - core index']
  #allocation1 [shape = 'u32[144,128]{1,0:T(1,128)}', space=vmem, size = 0x12000, scoped, tag = 'internal scratch']
  %s0 = inlined_call_operand.vmem [shape: s32[1,96], index: 0, kind: input, shape index: {}]
  %s1 = inlined_call_operand.vmem [shape: f32[200,96], index: 1, kind: input, shape index: {}]
  %s2 = inlined_call_operand.vmem [shape: s32[200,1], index: 2, kind: input, shape index: {}]
  %s3 = inlined_call_operand.hbm [shape: f32[2,8,128], index: 3, kind: output, shape index: {}]
  %s4 = sld [smem:[#allocation0]]
  $region53: #{tpu_custom_call.1} parent=0
    _
  %s6 = ssub.s32 1, %s4
  %s7 = scalar_select 0, %s6, %s4
  $region1: #{tpu_custom_call.1} parent=0
    #allocation2 [shape = 'u8[8192]{0}', space=vmem, size = 0x2000, scoped, tag = 'output window, operand 0']
    #allocation3 [shape = 's32[2]{0}', space=sflag, size = 0x8, scoped, tag = 'scoped memory for tpu_custom_call.1']
    %8 = vsyncpa [#allocation3], 0
    %s9 = scalar_lea.sflag [#allocation3], 1
    %10 = vsyncpa %s9, 0
    loop: start=0, step=1, limit=4
    $region2: #{tpu_custom_call.1} parent=1 // loop_pre_header
      _
    $region3: #{tpu_custom_call.1} parent=1 // loop_header
      %s12 = sphi 0, %s16
      %p13 = scmp.ge.s32.totalorder %s12, 4
      %s20 = sphi 0, %s20
      %s22 = sphi 0, %s20
      %s23 = sphi 0, %s22
      %s37 = sphi 0, %s23
      %s43 = sphi 0, %s45
      %s46 = sphi 0, %s43
      %s47 = sphi 0, %s46
      %s63 = sphi 0, %s47
      %s69 = sphi 0, %s71
      %s72 = sphi 0, %s69
      %s73 = sphi 0, %s72
      %s89 = sphi 0, %s73
      %s95 = sphi 0, %s97
      %s98 = sphi 0, %s95
      %s99 = sphi 0, %s98
      %s115 = sphi 0, %s99
    $region4: #{tpu_custom_call.1} parent=1 // loop_header_branch
      %15 = sbr.rel (%p13) target = $region8
    $region5: #{tpu_custom_call.1} parent=1 // loop_body
      %s17 = ssub.s32 %s12, 1
      %s18 = ssub.s32 %s12, 2
      %s19 = sadd.s32 %s12, 1
      %s21 = sadd.s32 %s20, 1
      %p24 = scmp.eq.s32.totalorder %s12, 1
      %p25 = scmp.ne.s32.totalorder %s20, %s22
      %p26 = scmp.eq.s32.totalorder %s12, 0
      %p27 = por %p25, %p26
      %p28 = scmp.ne.s32.totalorder %s20, %s22
      %p29 = scmp.eq.s32.totalorder %s17, 1
      %p30 = por %p28, %p29
      %p31 = scmp.ne.s32.totalorder %s22, %s23
      %p32 = scmp.eq.s32.totalorder %s17, 0
      %p33 = por %p31, %p32
      %p34 = scmp.ne.s32.totalorder %s22, %s23
      %p35 = scmp.eq.s32.totalorder %s18, 1
      %p36 = por %p34, %p35
      %p38 = scmp.ne.s32.totalorder %s23, %s37
      %p39 = scmp.eq.s32.totalorder %s18, 0
      %p40 = por %p38, %p39
      %s41 = ssub.s32 %s12, %s19
      %p42 = scmp.eq.s32.totalorder %s41, 0
      %s44 = sadd.s32 %s43, 1
      %s45 = scalar_select %p42, %s43, %s44
      %p48 = pneg %p42
      %p49 = scmp.eq.s32.totalorder %s12, 1
      %p50 = por %p48, %p49
      %p51 = scmp.ne.s32.totalorder %s43, %s46
      %p52 = scmp.eq.s32.totalorder %s12, 0
      %p53 = por %p51, %p52
      %p54 = scmp.ne.s32.totalorder %s43, %s46
      %p55 = scmp.eq.s32.totalorder %s17, 1
      %p56 = por %p54, %p55
      %p57 = scmp.ne.s32.totalorder %s46, %s47
      %p58 = scmp.eq.s32.totalorder %s17, 0
      %p59 = por %p57, %p58
      %p60 = scmp.ne.s32.totalorder %s46, %s47
      %p61 = scmp.eq.s32.totalorder %s18, 1
      %p62 = por %p60, %p61
      %p64 = scmp.ne.s32.totalorder %s47, %s63
      %p65 = scmp.eq.s32.totalorder %s18, 0
      %p66 = por %p64, %p65
      %s67 = ssub.s32 %s12, %s19
      %p68 = scmp.eq.s32.totalorder %s67, 0
      %s70 = sadd.s32 %s69, 1
      %s71 = scalar_select %p68, %s69, %s70
      %p74 = pneg %p68
      %p75 = scmp.eq.s32.totalorder %s12, 1
      %p76 = por %p74, %p75
      %p77 = scmp.ne.s32.totalorder %s69, %s72
      %p78 = scmp.eq.s32.totalorder %s12, 0
      %p79 = por %p77, %p78
      %p80 = scmp.ne.s32.totalorder %s69, %s72
      %p81 = scmp.eq.s32.totalorder %s17, 1
      %p82 = por %p80, %p81
      %p83 = scmp.ne.s32.totalorder %s72, %s73
      %p84 = scmp.eq.s32.totalorder %s17, 0
      %p85 = por %p83, %p84
      %p86 = scmp.ne.s32.totalorder %s72, %s73
      %p87 = scmp.eq.s32.totalorder %s18, 1
      %p88 = por %p86, %p87
      %p90 = scmp.ne.s32.totalorder %s73, %s89
      %p91 = scmp.eq.s32.totalorder %s18, 0
      %p92 = por %p90, %p91
      %s93 = ssub.s32 %s12, %s19
      %p94 = scmp.eq.s32.totalorder %s93, 0
      %s96 = sadd.s32 %s95, 1
      %s97 = scalar_select %p94, %s95, %s96
      %p100 = pneg %p94
      %p101 = scmp.eq.s32.totalorder %s12, 1
      %p102 = por %p100, %p101
      %p103 = scmp.ne.s32.totalorder %s95, %s98
      %p104 = scmp.eq.s32.totalorder %s12, 0
      %p105 = por %p103, %p104
      %p106 = scmp.ne.s32.totalorder %s95, %s98
      %p107 = scmp.eq.s32.totalorder %s17, 1
      %p108 = por %p106, %p107
      %p109 = scmp.ne.s32.totalorder %s98, %s99
      %p110 = scmp.eq.s32.totalorder %s17, 0
      %p111 = por %p109, %p110
      %p112 = scmp.ne.s32.totalorder %s98, %s99
      %p113 = scmp.eq.s32.totalorder %s18, 1
      %p114 = por %p112, %p113
      %p116 = scmp.ne.s32.totalorder %s99, %s115
      %p117 = scmp.eq.s32.totalorder %s18, 0
      %p118 = por %p116, %p117
      %p119 = scmp.le.s32.totalorder 1, %s12
      %p120 = scmp.lt.s32.totalorder %s12, 3
      %p121 = pnand %p119, %p120
      %p122 = pneg %p121
      // Predicated region
      $region9: #{tpu_custom_call.1} parent=5 // pred_check
        _
      $region10: #{tpu_custom_call.1} parent=5 // pred_check_branch
        %124 = sbr.rel (%p121) target = $region12
      $region11: #{tpu_custom_call.1} parent=5 // pred_region
        %s125 = ssub.s32 %s12, 1
        // Predicated region
        $region13: #{tpu_custom_call.1} parent=11 // pred_check
          %p126 = pneg %p33
        $region14: #{tpu_custom_call.1} parent=11 // pred_check_branch
          %128 = sbr.rel (%p126) target = $region16
        $region15: #{tpu_custom_call.1} parent=11 // pred_region
          _
        $region16: #{tpu_custom_call.1} parent=11 // pred_fallthru
          _
      $region12: #{tpu_custom_call.1} parent=5 // pred_fallthru
        _
      %p129 = scmp.lt.s32.totalorder %s12, 2
      // Predicated region
      $region17: #{tpu_custom_call.1} parent=5 // pred_check
        %p130 = pneg %p129
      $region18: #{tpu_custom_call.1} parent=5 // pred_check_branch
        %132 = sbr.rel (%p130) target = $region20
      $region19: #{tpu_custom_call.1} parent=5 // pred_region
        // Predicated region
        $region21: #{tpu_custom_call.1} parent=19 // pred_check
          %p133 = pneg %p53
        $region22: #{tpu_custom_call.1} parent=19 // pred_check_branch
          %135 = sbr.rel (%p133) target = $region24
        $region23: #{tpu_custom_call.1} parent=19 // pred_region
          %s136 = smul.u32 16, %s12
          %s137 = ssub.s32 25, %s136
          %p138 = scmp.lt.s32.totalorder %s137, 16
          %s139 = scalar_select %p138, %s137, 16
          %s140 = smul.u32 128, %s139
          %p141 = scmp.lt.s32.totalorder %s136, 24
          %s142 = scalar_select %p141, %s136, 24
          %s143 = smul.addr %s142, 8
          %s144 = scalar_lea.vmem %s1, %s143
          %s145 = smul.u32 16, %s12
          %s146 = ssub.s32 25, %s145
          %p147 = scmp.lt.s32.totalorder %s146, 16
          %s148 = scalar_select %p147, %s146, 16
          %s149 = smul.u32 128, %s148
        $region24: #{tpu_custom_call.1} parent=19 // pred_fallthru
          _
        // Predicated region
        $region25: #{tpu_custom_call.1} parent=19 // pred_check
          %p150 = pneg %p79
        $region26: #{tpu_custom_call.1} parent=19 // pred_check_branch
          %152 = sbr.rel (%p150) target = $region28
        $region27: #{tpu_custom_call.1} parent=19 // pred_region
          %s153 = smul.u32 16, %s12
          %s154 = ssub.s32 25, %s153
          %p155 = scmp.lt.s32.totalorder %s154, 16
          %s156 = scalar_select %p155, %s154, 16
          %s157 = smul.u32 128, %s156
          %p158 = scmp.lt.s32.totalorder %s153, 24
          %s159 = scalar_select %p158, %s153, 24
          %s160 = smul.addr %s159, 8
          %s161 = scalar_lea.vmem %s2, %s160
          %s162 = smul.u32 16, %s12
          %s163 = ssub.s32 25, %s162
          %p164 = scmp.lt.s32.totalorder %s163, 16
          %s165 = scalar_select %p164, %s163, 16
          %s166 = smul.u32 128, %s165
        $region28: #{tpu_custom_call.1} parent=19 // pred_fallthru
          _
      $region20: #{tpu_custom_call.1} parent=5 // pred_fallthru
        _
      %p167 = scmp.le.s32.totalorder 1, %s12
      %p168 = scmp.lt.s32.totalorder %s12, 3
      %p169 = pnand %p167, %p168
      %p170 = pneg %p169
      // Predicated region
      $region29: #{tpu_custom_call.1} parent=5 // pred_check
        _
      $region30: #{tpu_custom_call.1} parent=5 // pred_check_branch
        %172 = sbr.rel (%p169) target = $region32
      $region31: #{tpu_custom_call.1} parent=5 // pred_region
        %s173 = ssub.s32 %s12, 1
        %p174 = pneg %p33
        %p175 = pneg %p30
        %s176 = smul.u32 16, %s17
        %s177 = ssub.s32 25, %s176
        %p178 = scmp.lt.s32.totalorder %s177, 16
        %s179 = scalar_select %p178, %s177, 16
        %s180 = smul.u32 128, %s179
        %p181 = scmp.lt.s32.totalorder %s176, 24
        %s182 = scalar_select %p181, %s176, 24
        %s183 = smul.addr %s182, 8
        %s184 = scalar_lea.vmem %s1, %s183
        %p185 = pneg %p59
        %p186 = pneg %p56
        %s187 = smul.u32 16, %s17
        %s188 = ssub.s32 25, %s187
        %p189 = scmp.lt.s32.totalorder %s188, 16
        %s190 = scalar_select %p189, %s188, 16
        %s191 = smul.u32 128, %s190
        %p192 = scmp.lt.s32.totalorder %s187, 24
        %s193 = scalar_select %p192, %s187, 24
        %s194 = smul.addr %s193, 8
        %s195 = scalar_lea.vmem %s2, %s194
        %p196 = pneg %p85
        %p197 = pneg %p82
        %p198 = pneg %p111
        %p199 = pneg %p108
        %s200 = sand.u32 %s98, 1
        %s201 = scalar_lea.sflag [#allocation3], %s200
        %s202 = sand.u32 %s98, 1
        %s203 = smul.addr %s202, 8
        %s204 = scalar_lea.vmem [#allocation2], %s203
        %s205 = smul.u32 16, %s17
        %s206 = ssub.s32 25, %s205
        %p207 = scmp.lt.s32.totalorder %s206, 16
        %s208 = scalar_select %p207, %s206, 16
        %s209 = smul.u32 128, %s208
        %p210 = scmp.lt.s32.totalorder %s205, 24
        %s211 = scalar_select %p210, %s205, 24
        %s212 = smul.addr %s211, 8
        %s213 = scalar_lea.vmem %s1, %s212
        %s214 = smul.u32 16, %s17
        %s215 = ssub.s32 25, %s214
        %p216 = scmp.lt.s32.totalorder %s215, 16
        %s217 = scalar_select %p216, %s215, 16
        %s218 = smul.u32 128, %s217
        %s219 = smul.u32 16, %s17
        %s220 = ssub.s32 25, %s219
        %p221 = scmp.lt.s32.totalorder %s220, 16
        %s222 = scalar_select %p221, %s220, 16
        %s223 = smul.u32 128, %s222
        %p224 = scmp.lt.s32.totalorder %s219, 24
        %s225 = scalar_select %p224, %s219, 24
        %s226 = smul.addr %s225, 8
        %s227 = scalar_lea.vmem %s2, %s226
        %s228 = smul.u32 16, %s17
        %s229 = ssub.s32 25, %s228
        %p230 = scmp.lt.s32.totalorder %s229, 16
        %s231 = scalar_select %p230, %s229, 16
        %s232 = smul.u32 128, %s231
        %v233 = vld [vmem:[%s213] sm:$0xff]
        %v234 = vld [vmem:[%s213 + $0x8] sm:$0xff]
        %v235 = vld [vmem:[%s213 + $0x10] sm:$0xff]
        %v236 = vld [vmem:[%s213 + $0x18] sm:$0xff]
        %v237 = vld [vmem:[%s213 + $0x20] sm:$0xff]
        %v238 = vld [vmem:[%s213 + $0x28] sm:$0xff]
        %v239 = vld [vmem:[%s213 + $0x30] sm:$0xff]
        %v240 = vld [vmem:[%s213 + $0x38] sm:$0xff]
        %v241 = vld [vmem:[%s213 + $0x40] sm:$0xff]
        %v242 = vld [vmem:[%s213 + $0x48] sm:$0xff]
        %v243 = vld [vmem:[%s213 + $0x50] sm:$0xff]
        %v244 = vld [vmem:[%s213 + $0x58] sm:$0xff]
        %v245 = vld [vmem:[%s213 + $0x60] sm:$0xff]
        %v246 = vld [vmem:[%s213 + $0x68] sm:$0xff]
        %v247 = vld [vmem:[%s213 + $0x70] sm:$0xff]
        %v248 = vld [vmem:[%s213 + $0x78] sm:$0xff]
        %v249 = vld [vmem:[%s227] sm:$0xff]
        %v250 = vld [vmem:[%s227 + $0x8] sm:$0xff]
        %v251 = vld [vmem:[%s227 + $0x10] sm:$0xff]
        %v252 = vld [vmem:[%s227 + $0x18] sm:$0xff]
        %v253 = vld [vmem:[%s227 + $0x20] sm:$0xff]
        %v254 = vld [vmem:[%s227 + $0x28] sm:$0xff]
        %v255 = vld [vmem:[%s227 + $0x30] sm:$0xff]
        %v256 = vld [vmem:[%s227 + $0x38] sm:$0xff]
        %v257 = vld [vmem:[%s227 + $0x40] sm:$0xff]
        %v258 = vld [vmem:[%s227 + $0x48] sm:$0xff]
        %v259 = vld [vmem:[%s227 + $0x50] sm:$0xff]
        %v260 = vld [vmem:[%s227 + $0x58] sm:$0xff]
        %v261 = vld [vmem:[%s227 + $0x60] sm:$0xff]
        %v262 = vld [vmem:[%s227 + $0x68] sm:$0xff]
        %v263 = vld [vmem:[%s227 + $0x70] sm:$0xff]
        %v264 = vld [vmem:[%s227 + $0x78] sm:$0xff]
        %v265 = vld [vmem:[%s0] sm:$0x1]
        %vm266 = vcmask 785408
        %v267 = vsel %vm266, %v233, -inf
        %268 = vmax.xlane.f32.xlu0 %v267
        %v269 = vpop.xlane.xlu0 %268
        %v270 = vsel %vm266, %v234, -inf
        %271 = vmax.xlane.f32.xlu0 %v270
        %v272 = vpop.xlane.xlu0 %271
        %v273 = vsel %vm266, %v235, -inf
        %274 = vmax.xlane.f32.xlu0 %v273
        %v275 = vpop.xlane.xlu0 %274
        %v276 = vsel %vm266, %v236, -inf
        %277 = vmax.xlane.f32.xlu0 %v276
        %v278 = vpop.xlane.xlu0 %277
        %v279 = vsel %vm266, %v237, -inf
        %280 = vmax.xlane.f32.xlu0 %v279
        %v281 = vpop.xlane.xlu0 %280
        %v282 = vsel %vm266, %v238, -inf
        %283 = vmax.xlane.f32.xlu0 %v282
        %v284 = vpop.xlane.xlu0 %283
        %v285 = vsel %vm266, %v239, -inf
        %286 = vmax.xlane.f32.xlu0 %v285
        %v287 = vpop.xlane.xlu0 %286
        %v288 = vsel %vm266, %v240, -inf
        %289 = vmax.xlane.f32.xlu0 %v288
        %v290 = vpop.xlane.xlu0 %289
        %v291 = vsel %vm266, %v241, -inf
        %292 = vmax.xlane.f32.xlu0 %v291
        %v293 = vpop.xlane.xlu0 %292
        %v294 = vsel %vm266, %v242, -inf
        %295 = vmax.xlane.f32.xlu0 %v294
        %v296 = vpop.xlane.xlu0 %295
        %v297 = vsel %vm266, %v243, -inf
        %298 = vmax.xlane.f32.xlu0 %v297
        %v299 = vpop.xlane.xlu0 %298
        %v300 = vsel %vm266, %v244, -inf
        %301 = vmax.xlane.f32.xlu0 %v300
        %v302 = vpop.xlane.xlu0 %301
        %v303 = vsel %vm266, %v245, -inf
        %304 = vmax.xlane.f32.xlu0 %v303
        %v305 = vpop.xlane.xlu0 %304
        %v306 = vsel %vm266, %v246, -inf
        %307 = vmax.xlane.f32.xlu0 %v306
        %v308 = vpop.xlane.xlu0 %307
        %v309 = vsel %vm266, %v247, -inf
        %310 = vmax.xlane.f32.xlu0 %v309
        %v311 = vpop.xlane.xlu0 %310
        %v312 = vsel %vm266, %v248, -inf
        %313 = vmax.xlane.f32.xlu0 %v312
        %v314 = vpop.xlane.xlu0 %313
        %v315 = vsub.f32 %v233, %v269
        %v316 = vsub.f32 %v234, %v272
        %v317 = vsub.f32 %v235, %v275
        %v318 = vsub.f32 %v236, %v278
        %v319 = vsub.f32 %v237, %v281
        %v320 = vsub.f32 %v238, %v284
        %v321 = vsub.f32 %v239, %v287
        %v322 = vsub.f32 %v240, %v290
        %v323 = vsub.f32 %v241, %v293
        %v324 = vsub.f32 %v242, %v296
        %v325 = vsub.f32 %v243, %v299
        %v326 = vsub.f32 %v244, %v302
        %v327 = vsub.f32 %v245, %v305
        %v328 = vsub.f32 %v246, %v308
        %v329 = vsub.f32 %v247, %v311
        %v330 = vsub.f32 %v248, %v314
        %v331 = vmul.f32 %v315, 1.442695
        %v332 = vpow.pop %v331
        %v333 = vmul.f32 %v316, 1.442695
        %v334 = vpow.pop %v333
        %v335 = vmul.f32 %v317, 1.442695
        %v336 = vpow.pop %v335
        %v337 = vmul.f32 %v318, 1.442695
        %v338 = vpow.pop %v337
        %v339 = vmul.f32 %v319, 1.442695
        %v340 = vpow.pop %v339
        %v341 = vmul.f32 %v320, 1.442695
        %v342 = vpow.pop %v341
        %v343 = vmul.f32 %v321, 1.442695
        %v344 = vpow.pop %v343
        %v345 = vmul.f32 %v322, 1.442695
        %v346 = vpow.pop %v345
        %v347 = vmul.f32 %v323, 1.442695
        %v348 = vpow.pop %v347
        %v349 = vmul.f32 %v324, 1.442695
        %v350 = vpow.pop %v349
        %v351 = vmul.f32 %v325, 1.442695
        %v352 = vpow.pop %v351
        %v353 = vmul.f32 %v326, 1.442695
        %v354 = vpow.pop %v353
        %v355 = vmul.f32 %v327, 1.442695
        %v356 = vpow.pop %v355
        %v357 = vmul.f32 %v328, 1.442695
        %v358 = vpow.pop %v357
        %v359 = vmul.f32 %v329, 1.442695
        %v360 = vpow.pop %v359
        %v361 = vmul.f32 %v330, 1.442695
        %v362 = vpow.pop %v361
        %v363 = vsel %vm266, %v332, 0.0
        %364 = vadd.xlane.f32.xlu0 %v363
        %v365 = vpop.xlane.xlu0 %364
        %v366 = vsel %vm266, %v334, 0.0
        %367 = vadd.xlane.f32.xlu0 %v366
        %v368 = vpop.xlane.xlu0 %367
        %v369 = vsel %vm266, %v336, 0.0
        %370 = vadd.xlane.f32.xlu0 %v369
        %v371 = vpop.xlane.xlu0 %370
        %v372 = vsel %vm266, %v338, 0.0
        %373 = vadd.xlane.f32.xlu0 %v372
        %v374 = vpop.xlane.xlu0 %373
        %v375 = vsel %vm266, %v340, 0.0
        %376 = vadd.xlane.f32.xlu0 %v375
        %v377 = vpop.xlane.xlu0 %376
        %v378 = vsel %vm266, %v342, 0.0
        %379 = vadd.xlane.f32.xlu0 %v378
        %v380 = vpop.xlane.xlu0 %379
        %v381 = vsel %vm266, %v344, 0.0
        %382 = vadd.xlane.f32.xlu0 %v381
        %v383 = vpop.xlane.xlu0 %382
        %v384 = vsel %vm266, %v346, 0.0
        %385 = vadd.xlane.f32.xlu0 %v384
        %v386 = vpop.xlane.xlu0 %385
        %v387 = vsel %vm266, %v348, 0.0
        %388 = vadd.xlane.f32.xlu0 %v387
        %v389 = vpop.xlane.xlu0 %388
        %v390 = vsel %vm266, %v350, 0.0
        %391 = vadd.xlane.f32.xlu0 %v390
        %v392 = vpop.xlane.xlu0 %391
        %v393 = vsel %vm266, %v352, 0.0
        %394 = vadd.xlane.f32.xlu0 %v393
        %v395 = vpop.xlane.xlu0 %394
        %v396 = vsel %vm266, %v354, 0.0
        %397 = vadd.xlane.f32.xlu0 %v396
        %v398 = vpop.xlane.xlu0 %397
        %v399 = vsel %vm266, %v356, 0.0
        %400 = vadd.xlane.f32.xlu0 %v399
        %v401 = vpop.xlane.xlu0 %400
        %v402 = vsel %vm266, %v358, 0.0
        %403 = vadd.xlane.f32.xlu0 %v402
        %v404 = vpop.xlane.xlu0 %403
        %v405 = vsel %vm266, %v360, 0.0
        %406 = vadd.xlane.f32.xlu0 %v405
        %v407 = vpop.xlane.xlu0 %406
        %v408 = vsel %vm266, %v362, 0.0
        %409 = vadd.xlane.f32.xlu0 %v408
        %v410 = vpop.xlane.xlu0 %409
        %v411 = vlog2.pop %v365
        %v412 = vmul.f32 %v411, 0.6931472
        %v413 = vlog2.pop %v368
        %v414 = vmul.f32 %v413, 0.6931472
        %v415 = vlog2.pop %v371
        %v416 = vmul.f32 %v415, 0.6931472
        %v417 = vlog2.pop %v374
        %v418 = vmul.f32 %v417, 0.6931472
        %v419 = vlog2.pop %v377
        %v420 = vmul.f32 %v419, 0.6931472
        %v421 = vlog2.pop %v380
        %v422 = vmul.f32 %v421, 0.6931472
        %v423 = vlog2.pop %v383
        %v424 = vmul.f32 %v423, 0.6931472
        %v425 = vlog2.pop %v386
        %v426 = vmul.f32 %v425, 0.6931472
        %v427 = vlog2.pop %v389
        %v428 = vmul.f32 %v427, 0.6931472
        %v429 = vlog2.pop %v392
        %v430 = vmul.f32 %v429, 0.6931472
        %v431 = vlog2.pop %v395
        %v432 = vmul.f32 %v431, 0.6931472
        %v433 = vlog2.pop %v398
        %v434 = vmul.f32 %v433, 0.6931472
        %v435 = vlog2.pop %v401
        %v436 = vmul.f32 %v435, 0.6931472
        %v437 = vlog2.pop %v404
        %v438 = vmul.f32 %v437, 0.6931472
        %v439 = vlog2.pop %v407
        %v440 = vmul.f32 %v439, 0.6931472
        %v441 = vlog2.pop %v410
        %v442 = vmul.f32 %v441, 0.6931472
        %v443 = vlaneseq
        %v444 = vshrl.u32 %v443, 7
        %v445 = vsub.s32 0, %v444
        %v446 = vrot.slane %v265, %v445
        %447 = vset.pattern.permute.xlu0 0
        %448 = vperm.xlu0 %447, %v249
        %v449 = vpop.permute.xlu0 %448
        %450 = vset.pattern.permute.xlu0 0
        %451 = vperm.xlu0 %450, %v250
        %v452 = vpop.permute.xlu0 %451
        %453 = vset.pattern.permute.xlu0 0
        %454 = vperm.xlu0 %453, %v251
        %v455 = vpop.permute.xlu0 %454
        %456 = vset.pattern.permute.xlu0 0
        %457 = vperm.xlu0 %456, %v252
        %v458 = vpop.permute.xlu0 %457
        %459 = vset.pattern.permute.xlu0 0
        %460 = vperm.xlu0 %459, %v253
        %v461 = vpop.permute.xlu0 %460
        %462 = vset.pattern.permute.xlu0 0
        %463 = vperm.xlu0 %462, %v254
        %v464 = vpop.permute.xlu0 %463
        %465 = vset.pattern.permute.xlu0 0
        %466 = vperm.xlu0 %465, %v255
        %v467 = vpop.permute.xlu0 %466
        %468 = vset.pattern.permute.xlu0 0
        %469 = vperm.xlu0 %468, %v256
        %v470 = vpop.permute.xlu0 %469
        %471 = vset.pattern.permute.xlu0 0
        %472 = vperm.xlu0 %471, %v257
        %v473 = vpop.permute.xlu0 %472
        %474 = vset.pattern.permute.xlu0 0
        %475 = vperm.xlu0 %474, %v258
        %v476 = vpop.permute.xlu0 %475
        %477 = vset.pattern.permute.xlu0 0
        %478 = vperm.xlu0 %477, %v259
        %v479 = vpop.permute.xlu0 %478
        %480 = vset.pattern.permute.xlu0 0
        %481 = vperm.xlu0 %480, %v260
        %v482 = vpop.permute.xlu0 %481
        %483 = vset.pattern.permute.xlu0 0
        %484 = vperm.xlu0 %483, %v261
        %v485 = vpop.permute.xlu0 %484
        %486 = vset.pattern.permute.xlu0 0
        %487 = vperm.xlu0 %486, %v262
        %v488 = vpop.permute.xlu0 %487
        %489 = vset.pattern.permute.xlu0 0
        %490 = vperm.xlu0 %489, %v263
        %v491 = vpop.permute.xlu0 %490
        %492 = vset.pattern.permute.xlu0 0
        %493 = vperm.xlu0 %492, %v264
        %v494 = vpop.permute.xlu0 %493
        %vm495 = vcmp.eq.s32.totalorder %v446, %v449
        %vm496 = vcmp.eq.s32.totalorder %v446, %v452
        %vm497 = vcmp.eq.s32.totalorder %v446, %v455
        %vm498 = vcmp.eq.s32.totalorder %v446, %v458
        %vm499 = vcmp.eq.s32.totalorder %v446, %v461
        %vm500 = vcmp.eq.s32.totalorder %v446, %v464
        %vm501 = vcmp.eq.s32.totalorder %v446, %v467
        %vm502 = vcmp.eq.s32.totalorder %v446, %v470
        %vm503 = vcmp.eq.s32.totalorder %v446, %v473
        %vm504 = vcmp.eq.s32.totalorder %v446, %v476
        %vm505 = vcmp.eq.s32.totalorder %v446, %v479
        %vm506 = vcmp.eq.s32.totalorder %v446, %v482
        %vm507 = vcmp.eq.s32.totalorder %v446, %v485
        %vm508 = vcmp.eq.s32.totalorder %v446, %v488
        %vm509 = vcmp.eq.s32.totalorder %v446, %v491
        %vm510 = vcmp.eq.s32.totalorder %v446, %v494
        %v511 = vsel %vm495, %v315, 0.0
        %v512 = vsel %vm496, %v316, 0.0
        %v513 = vsel %vm497, %v317, 0.0
        %v514 = vsel %vm498, %v318, 0.0
        %v515 = vsel %vm499, %v319, 0.0
        %v516 = vsel %vm500, %v320, 0.0
        %v517 = vsel %vm501, %v321, 0.0
        %v518 = vsel %vm502, %v322, 0.0
        %v519 = vsel %vm503, %v323, 0.0
        %v520 = vsel %vm504, %v324, 0.0
        %v521 = vsel %vm505, %v325, 0.0
        %v522 = vsel %vm506, %v326, 0.0
        %v523 = vsel %vm507, %v327, 0.0
        %v524 = vsel %vm508, %v328, 0.0
        %v525 = vsel %vm509, %v329, 0.0
        %v526 = vsel %vm510, %v330, 0.0
        %v527 = vsel %vm266, %v511, 0.0
        %528 = vadd.xlane.f32.xlu0 %v527
        %v529 = vpop.xlane.xlu0 %528
        %v530 = vsel %vm266, %v512, 0.0
        %531 = vadd.xlane.f32.xlu0 %v530
        %v532 = vpop.xlane.xlu0 %531
        %v533 = vsel %vm266, %v513, 0.0
        %534 = vadd.xlane.f32.xlu0 %v533
        %v535 = vpop.xlane.xlu0 %534
        %v536 = vsel %vm266, %v514, 0.0
        %537 = vadd.xlane.f32.xlu0 %v536
        %v538 = vpop.xlane.xlu0 %537
        %v539 = vsel %vm266, %v515, 0.0
        %540 = vadd.xlane.f32.xlu0 %v539
        %v541 = vpop.xlane.xlu0 %540
        %v542 = vsel %vm266, %v516, 0.0
        %543 = vadd.xlane.f32.xlu0 %v542
        %v544 = vpop.xlane.xlu0 %543
        %v545 = vsel %vm266, %v517, 0.0
        %546 = vadd.xlane.f32.xlu0 %v545
        %v547 = vpop.xlane.xlu0 %546
        %v548 = vsel %vm266, %v518, 0.0
        %549 = vadd.xlane.f32.xlu0 %v548
        %v550 = vpop.xlane.xlu0 %549
        %v551 = vsel %vm266, %v519, 0.0
        %552 = vadd.xlane.f32.xlu0 %v551
        %v553 = vpop.xlane.xlu0 %552
        %v554 = vsel %vm266, %v520, 0.0
        %555 = vadd.xlane.f32.xlu0 %v554
        %v556 = vpop.xlane.xlu0 %555
        %v557 = vsel %vm266, %v521, 0.0
        %558 = vadd.xlane.f32.xlu0 %v557
        %v559 = vpop.xlane.xlu0 %558
        %v560 = vsel %vm266, %v522, 0.0
        %561 = vadd.xlane.f32.xlu0 %v560
        %v562 = vpop.xlane.xlu0 %561
        %v563 = vsel %vm266, %v523, 0.0
        %564 = vadd.xlane.f32.xlu0 %v563
        %v565 = vpop.xlane.xlu0 %564
        %v566 = vsel %vm266, %v524, 0.0
        %567 = vadd.xlane.f32.xlu0 %v566
        %v568 = vpop.xlane.xlu0 %567
        %v569 = vsel %vm266, %v525, 0.0
        %570 = vadd.xlane.f32.xlu0 %v569
        %v571 = vpop.xlane.xlu0 %570
        %v572 = vsel %vm266, %v526, 0.0
        %573 = vadd.xlane.f32.xlu0 %v572
        %v574 = vpop.xlane.xlu0 %573
        %v575 = vsel %vm266, %v315, 0.0
        %576 = vadd.xlane.f32.xlu0 %v575
        %v577 = vpop.xlane.xlu0 %576
        %v578 = vsel %vm266, %v316, 0.0
        %579 = vadd.xlane.f32.xlu0 %v578
        %v580 = vpop.xlane.xlu0 %579
        %v581 = vsel %vm266, %v317, 0.0
        %582 = vadd.xlane.f32.xlu0 %v581
        %v583 = vpop.xlane.xlu0 %582
        %v584 = vsel %vm266, %v318, 0.0
        %585 = vadd.xlane.f32.xlu0 %v584
        %v586 = vpop.xlane.xlu0 %585
        %v587 = vsel %vm266, %v319, 0.0
        %588 = vadd.xlane.f32.xlu0 %v587
        %v589 = vpop.xlane.xlu0 %588
        %v590 = vsel %vm266, %v320, 0.0
        %591 = vadd.xlane.f32.xlu0 %v590
        %v592 = vpop.xlane.xlu0 %591
        %v593 = vsel %vm266, %v321, 0.0
        %594 = vadd.xlane.f32.xlu0 %v593
        %v595 = vpop.xlane.xlu0 %594
        %v596 = vsel %vm266, %v322, 0.0
        %597 = vadd.xlane.f32.xlu0 %v596
        %v598 = vpop.xlane.xlu0 %597
        %v599 = vsel %vm266, %v323, 0.0
        %600 = vadd.xlane.f32.xlu0 %v599
        %v601 = vpop.xlane.xlu0 %600
        %v602 = vsel %vm266, %v324, 0.0
        %603 = vadd.xlane.f32.xlu0 %v602
        %v604 = vpop.xlane.xlu0 %603
        %v605 = vsel %vm266, %v325, 0.0
        %606 = vadd.xlane.f32.xlu0 %v605
        %v607 = vpop.xlane.xlu0 %606
        %v608 = vsel %vm266, %v326, 0.0
        %609 = vadd.xlane.f32.xlu0 %v608
        %v610 = vpop.xlane.xlu0 %609
        %v611 = vsel %vm266, %v327, 0.0
        %612 = vadd.xlane.f32.xlu0 %v611
        %v613 = vpop.xlane.xlu0 %612
        %v614 = vsel %vm266, %v328, 0.0
        %615 = vadd.xlane.f32.xlu0 %v614
        %v616 = vpop.xlane.xlu0 %615
        %v617 = vsel %vm266, %v329, 0.0
        %618 = vadd.xlane.f32.xlu0 %v617
        %v619 = vpop.xlane.xlu0 %618
        %v620 = vsel %vm266, %v330, 0.0
        %621 = vadd.xlane.f32.xlu0 %v620
        %v622 = vpop.xlane.xlu0 %621
        %v623 = vmul.f32 %v529, 0.9
        %v624 = vmul.f32 %v532, 0.9
        %v625 = vmul.f32 %v535, 0.9
        %v626 = vmul.f32 %v538, 0.9
        %v627 = vmul.f32 %v541, 0.9
        %v628 = vmul.f32 %v544, 0.9
        %v629 = vmul.f32 %v547, 0.9
        %v630 = vmul.f32 %v550, 0.9
        %v631 = vmul.f32 %v553, 0.9
        %v632 = vmul.f32 %v556, 0.9
        %v633 = vmul.f32 %v559, 0.9
        %v634 = vmul.f32 %v562, 0.9
        %v635 = vmul.f32 %v565, 0.9
        %v636 = vmul.f32 %v568, 0.9
        %v637 = vmul.f32 %v571, 0.9
        %v638 = vmul.f32 %v574, 0.9
        %v639 = vsub.f32 %v412, %v623
        %v640 = vsub.f32 %v414, %v624
        %v641 = vsub.f32 %v416, %v625
        %v642 = vsub.f32 %v418, %v626
        %v643 = vsub.f32 %v420, %v627
        %v644 = vsub.f32 %v422, %v628
        %v645 = vsub.f32 %v424, %v629
        %v646 = vsub.f32 %v426, %v630
        %v647 = vsub.f32 %v428, %v631
        %v648 = vsub.f32 %v430, %v632
        %v649 = vsub.f32 %v432, %v633
        %v650 = vsub.f32 %v434, %v634
        %v651 = vsub.f32 %v436, %v635
        %v652 = vsub.f32 %v438, %v636
        %v653 = vsub.f32 %v440, %v637
        %v654 = vsub.f32 %v442, %v638
        %v655 = vmul.f32 %v577, 0.0010416667
        %v656 = vmul.f32 %v580, 0.0010416667
        %v657 = vmul.f32 %v583, 0.0010416667
        %v658 = vmul.f32 %v586, 0.0010416667
        %v659 = vmul.f32 %v589, 0.0010416667
        %v660 = vmul.f32 %v592, 0.0010416667
        %v661 = vmul.f32 %v595, 0.0010416667
        %v662 = vmul.f32 %v598, 0.0010416667
        %v663 = vmul.f32 %v601, 0.0010416667
        %v664 = vmul.f32 %v604, 0.0010416667
        %v665 = vmul.f32 %v607, 0.0010416667
        %v666 = vmul.f32 %v610, 0.0010416667
        %v667 = vmul.f32 %v613, 0.0010416667
        %v668 = vmul.f32 %v616, 0.0010416667
        %v669 = vmul.f32 %v619, 0.0010416667
        %v670 = vmul.f32 %v622, 0.0010416667
        %v671 = vsub.f32 %v639, %v655
        %v672 = vsub.f32 %v640, %v656
        %v673 = vsub.f32 %v641, %v657
        %v674 = vsub.f32 %v642, %v658
        %v675 = vsub.f32 %v643, %v659
        %v676 = vsub.f32 %v644, %v660
        %v677 = vsub.f32 %v645, %v661
        %v678 = vsub.f32 %v646, %v662
        %v679 = vsub.f32 %v647, %v663
        %v680 = vsub.f32 %v648, %v664
        %v681 = vsub.f32 %v649, %v665
        %v682 = vsub.f32 %v650, %v666
        %v683 = vsub.f32 %v651, %v667
        %v684 = vsub.f32 %v652, %v668
        %v685 = vsub.f32 %v653, %v669
        %v686 = vsub.f32 %v654, %v670
        %p687 = scmp.ne.s32.totalorder %s17, 1
        // Predicated region
        $region33: #{tpu_custom_call.1} parent=31 // pred_check
          %p688 = pneg %p687
        $region34: #{tpu_custom_call.1} parent=31 // pred_check_branch
          %690 = sbr.rel (%p688) target = $region36
        $region35: #{tpu_custom_call.1} parent=31 // pred_region
          %vm691 = vcmask 7168
          %v692 = vsel %vm691, %v671, 0.0
          %v693 = vsel %vm691, %v672, 0.0
          %v694 = vadd.f32 %v692, %v693
          %v695 = vsel %vm691, %v673, 0.0
          %v696 = vadd.f32 %v694, %v695
          %v697 = vsel %vm691, %v674, 0.0
          %v698 = vadd.f32 %v696, %v697
          %v699 = vsel %vm691, %v675, 0.0
          %v700 = vadd.f32 %v698, %v699
          %v701 = vsel %vm691, %v676, 0.0
          %v702 = vadd.f32 %v700, %v701
          %v703 = vsel %vm691, %v677, 0.0
          %v704 = vadd.f32 %v702, %v703
          %v705 = vsel %vm691, %v678, 0.0
          %v706 = vadd.f32 %v704, %v705
          %v707 = vsel %vm691, %v679, 0.0
          %v708 = vadd.f32 %v706, %v707
          %v709 = vsel %vm691, %v680, 0.0
          %v710 = vadd.f32 %v708, %v709
          %v711 = vsel %vm691, %v681, 0.0
          %v712 = vadd.f32 %v710, %v711
          %v713 = vsel %vm691, %v682, 0.0
          %v714 = vadd.f32 %v712, %v713
          %v715 = vsel %vm691, %v683, 0.0
          %v716 = vadd.f32 %v714, %v715
          %v717 = vsel %vm691, %v684, 0.0
          %v718 = vadd.f32 %v716, %v717
          %v719 = vsel %vm691, %v685, 0.0
          %v720 = vadd.f32 %v718, %v719
          %v721 = vsel %vm691, %v686, 0.0
          %v722 = vadd.f32 %v720, %v721
          %723 = vadd.xlane.f32.xlu0 %v722
          %v724 = vpop.xlane.xlu0 %723
          %v725 = vrot.slane %v724, 4
          %v726 = vadd.f32 %v724, %v725
          %v727 = vrot.slane %v726, 2
          %v728 = vadd.f32 %v726, %v727
          %v729 = vrot.slane %v728, 1
          %v730 = vadd.f32 %v728, %v729
          %s731 = vtos %v730
          %v732 = vstv %s731
          %733 = vst [vmem:[%s204] sm:$0xff] %v732
        $region36: #{tpu_custom_call.1} parent=31 // pred_fallthru
          _
        %p734 = scmp.eq.s32.totalorder %s17, 1
        // Predicated region
        $region37: #{tpu_custom_call.1} parent=31 // pred_check
          %p735 = pneg %p734
        $region38: #{tpu_custom_call.1} parent=31 // pred_check_branch
          %737 = sbr.rel (%p735) target = $region40
        $region39: #{tpu_custom_call.1} parent=31 // pred_region
          %v738 = vlaneseq
          %v739 = vshrl.u32 %v738, 7
          %v740 = vadd.s32 %v739, 8
          %v741 = vadd.s32 %v739, 16
          %v742 = vadd.s32 %v739, 24
          %v743 = vadd.s32 %v739, 32
          %v744 = vadd.s32 %v739, 40
          %v745 = vadd.s32 %v739, 48
          %v746 = vadd.s32 %v739, 56
          %v747 = vadd.s32 %v739, 64
          %v748 = vadd.s32 %v739, 72
          %v749 = vadd.s32 %v739, 80
          %v750 = vadd.s32 %v739, 88
          %v751 = vadd.s32 %v739, 96
          %v752 = vadd.s32 %v739, 104
          %v753 = vadd.s32 %v739, 112
          %v754 = vadd.s32 %v739, 120
          %s755 = smul.u32 %s17, 128
          %v756 = vstv %s755
          %v757 = vadd.s32 %v756, %v739
          %v758 = vadd.s32 %v756, %v740
          %v759 = vadd.s32 %v756, %v741
          %v760 = vadd.s32 %v756, %v742
          %v761 = vadd.s32 %v756, %v743
          %v762 = vadd.s32 %v756, %v744
          %v763 = vadd.s32 %v756, %v745
          %v764 = vadd.s32 %v756, %v746
          %v765 = vadd.s32 %v756, %v747
          %v766 = vadd.s32 %v756, %v748
          %v767 = vadd.s32 %v756, %v749
          %v768 = vadd.s32 %v756, %v750
          %v769 = vadd.s32 %v756, %v751
          %v770 = vadd.s32 %v756, %v752
          %v771 = vadd.s32 %v756, %v753
          %v772 = vadd.s32 %v756, %v754
          %vm773 = vcmp.lt.s32.totalorder %v757, 200
          %vm774 = vcmp.lt.s32.totalorder %v758, 200
          %vm775 = vcmp.lt.s32.totalorder %v759, 200
          %vm776 = vcmp.lt.s32.totalorder %v760, 200
          %vm777 = vcmp.lt.s32.totalorder %v761, 200
          %vm778 = vcmp.lt.s32.totalorder %v762, 200
          %vm779 = vcmp.lt.s32.totalorder %v763, 200
          %vm780 = vcmp.lt.s32.totalorder %v764, 200
          %vm781 = vcmp.lt.s32.totalorder %v765, 200
          %vm782 = vcmp.lt.s32.totalorder %v766, 200
          %vm783 = vcmp.lt.s32.totalorder %v767, 200
          %vm784 = vcmp.lt.s32.totalorder %v768, 200
          %vm785 = vcmp.lt.s32.totalorder %v769, 200
          %vm786 = vcmp.lt.s32.totalorder %v770, 200
          %vm787 = vcmp.lt.s32.totalorder %v771, 200
          %vm788 = vcmp.lt.s32.totalorder %v772, 200
          %v789 = vsel %vm773, %v671, 0.0
          %v790 = vsel %vm774, %v672, 0.0
          %v791 = vsel %vm775, %v673, 0.0
          %v792 = vsel %vm776, %v674, 0.0
          %v793 = vsel %vm777, %v675, 0.0
          %v794 = vsel %vm778, %v676, 0.0
          %v795 = vsel %vm779, %v677, 0.0
          %v796 = vsel %vm780, %v678, 0.0
          %v797 = vsel %vm781, %v679, 0.0
          %v798 = vsel %vm782, %v680, 0.0
          %v799 = vsel %vm783, %v681, 0.0
          %v800 = vsel %vm784, %v682, 0.0
          %v801 = vsel %vm785, %v683, 0.0
          %v802 = vsel %vm786, %v684, 0.0
          %v803 = vsel %vm787, %v685, 0.0
          %v804 = vsel %vm788, %v686, 0.0
          %vm805 = vcmask 7168
          %v806 = vsel %vm805, %v789, 0.0
          %v807 = vsel %vm805, %v790, 0.0
          %v808 = vadd.f32 %v806, %v807
          %v809 = vsel %vm805, %v791, 0.0
          %v810 = vadd.f32 %v808, %v809
          %v811 = vsel %vm805, %v792, 0.0
          %v812 = vadd.f32 %v810, %v811
          %v813 = vsel %vm805, %v793, 0.0
          %v814 = vadd.f32 %v812, %v813
          %v815 = vsel %vm805, %v794, 0.0
          %v816 = vadd.f32 %v814, %v815
          %v817 = vsel %vm805, %v795, 0.0
          %v818 = vadd.f32 %v816, %v817
          %v819 = vsel %vm805, %v796, 0.0
          %v820 = vadd.f32 %v818, %v819
          %v821 = vsel %vm805, %v797, 0.0
          %v822 = vadd.f32 %v820, %v821
          %v823 = vsel %vm805, %v798, 0.0
          %v824 = vadd.f32 %v822, %v823
          %v825 = vsel %vm805, %v799, 0.0
          %v826 = vadd.f32 %v824, %v825
          %v827 = vsel %vm805, %v800, 0.0
          %v828 = vadd.f32 %v826, %v827
          %v829 = vsel %vm805, %v801, 0.0
          %v830 = vadd.f32 %v828, %v829
          %v831 = vsel %vm805, %v802, 0.0
          %v832 = vadd.f32 %v830, %v831
          %v833 = vsel %vm805, %v803, 0.0
          %v834 = vadd.f32 %v832, %v833
          %v835 = vsel %vm805, %v804, 0.0
          %v836 = vadd.f32 %v834, %v835
          %837 = vadd.xlane.f32.xlu0 %v836
          %v838 = vpop.xlane.xlu0 %837
          %v839 = vrot.slane %v838, 4
          %v840 = vadd.f32 %v838, %v839
          %v841 = vrot.slane %v840, 2
          %v842 = vadd.f32 %v840, %v841
          %v843 = vrot.slane %v842, 1
          %v844 = vadd.f32 %v842, %v843
          %s845 = vtos %v844
          %v846 = vstv %s845
          %847 = vst [vmem:[%s204] sm:$0xff] %v846
        $region40: #{tpu_custom_call.1} parent=31 // pred_fallthru
          _
        %s848 = sand.u32 %s98, 1
        %s849 = scalar_lea.sflag [#allocation3], %s848
        %s850 = sand.u32 %s98, 1
        %s851 = smul.addr %s850, 8
        %s852 = scalar_lea.vmem [#allocation2], %s851
        // Predicated region
        $region41: #{tpu_custom_call.1} parent=31 // pred_check
          %p853 = pneg %p108
        $region42: #{tpu_custom_call.1} parent=31 // pred_check_branch
          %855 = sbr.rel (%p853) target = $region44
        $region43: #{tpu_custom_call.1} parent=31 // pred_region
          %s857 = ssub.s32 128, 128
          %858 = vsyncadd %s849, %s857
          %s859 = smul.addr %s17, 128
          %s860 = scalar_lea.hbm %s3, %s859
          %s862 = sshll.u32 %s852, 4
          %s863 = int_to_ptr.vmem [resolvable:$true] %s862
          %865 = dma.vmem_to_hbm [thread:$0]  %s863, 128, %s860, %s849
        $region44: #{tpu_custom_call.1} parent=31 // pred_fallthru
          _
      $region32: #{tpu_custom_call.1} parent=5 // pred_fallthru
        _
      %p866 = scmp.le.s32.totalorder 2, %s12
      // Predicated region
      $region45: #{tpu_custom_call.1} parent=5 // pred_check
        %p867 = pneg %p866
      $region46: #{tpu_custom_call.1} parent=5 // pred_check_branch
        %869 = sbr.rel (%p867) target = $region48
      $region47: #{tpu_custom_call.1} parent=5 // pred_region
        %s870 = ssub.s32 %s12, 2
        // Predicated region
        $region49: #{tpu_custom_call.1} parent=47 // pred_check
          %p871 = pneg %p114
        $region50: #{tpu_custom_call.1} parent=47 // pred_check_branch
          %873 = sbr.rel (%p871) target = $region52
        $region51: #{tpu_custom_call.1} parent=47 // pred_region
          %s874 = sand.u32 %s99, 1
          %s875 = scalar_lea.sflag [#allocation3], %s874
          %s876 = sand.u32 %s99, 1
          %s877 = smul.addr %s876, 8
          %s878 = scalar_lea.vmem [#allocation2], %s877
          %879 = dma.done %s875, 128
        $region52: #{tpu_custom_call.1} parent=47 // pred_fallthru
          _
      $region48: #{tpu_custom_call.1} parent=5 // pred_fallthru
        _
    $region6: #{tpu_custom_call.1} parent=1 // loop_footer
      %s16 = sadd.s32 1, %s12
    $region7: #{tpu_custom_call.1} parent=1 // loop_footer_branch
      %11 = sbr.rel target = $region3
    $region8: #{tpu_custom_call.1} parent=1 // loop_exit
      _
    %880 = vsyncpa [#allocation3], 1
    %s881 = scalar_lea.sflag [#allocation3], 1
    %882 = vsyncpa %s881, 1

</llo_original>
